<compile_context>
chip_gen: v6e
topology: v6e:2x2x1
jax: 0.10.0
libtpu: 0.0.40
codegen_flags: <defaults>
</compile_context>

<pallas_src>
import functools
import math

import jax
import jax.numpy as jnp
from jax.experimental import pallas as pl
from jax.experimental.pallas import tpu as pltpu

_LANES = 128


def _round_up(a, b):
    return (a + b - 1) // b * b


def _bce_l2l_kernel(logits_ref, targets_ref, loss_m_ref, psum_ref, *, n_valid):
    i = pl.program_id(0)

    x = logits_ref[...].astype(jnp.float32)
    t = targets_ref[...].astype(jnp.float32)

    # pos_weight = 1  ->  log_weight = 1 + (pos_weight - 1) * t = 1
    loss_m = (1.0 - t) * x + jnp.maximum(-x, 0.0) + jnp.log1p(jnp.exp(-jnp.abs(x)))

    # Mask out-of-range rows of the (possibly partial) boundary block: the
    # flat row-major index of any real element is < n_valid, anything else is
    # unspecified boundary data and must not reach loss_m or the reduction.
    tb, lanes = loss_m.shape
    row = jax.lax.broadcasted_iota(jnp.int32, (tb, lanes), 0)
    col = jax.lax.broadcasted_iota(jnp.int32, (tb, lanes), 1)
    flat_idx = (i * tb + row) * lanes + col
    loss_m = jnp.where(flat_idx < n_valid, loss_m, 0.0)

    loss_m_ref[...] = loss_m.astype(loss_m_ref.dtype)
    # Per-tile partial sum, reduced over the sublane axis only (XLU); the tiny
    # (num_tiles, 1, lanes) tensor is finished off in the wrapper.
    psum_ref[...] = jnp.sum(loss_m, axis=0, keepdims=True)[None]


def bce_loss_l2l(logits, targets, mask=None, ratio=0.5, size_average=True,
                 tile_rows=None, target_tile_bytes=2 * 1024 * 1024):
    """Pallas implementation of BCELoss_L2L.forward (sample_weight=None path).

    Returns ([loss], [loss_m]) just like the PyTorch module.
    """
    # TODO(synk): the `sample_weight is not None` branch (ratio2weight * mask
    # re-weighting, incl. the detach().cpu() targets_mask) is not exercised by
    # the default config and is omitted; `mask` / `ratio` therefore have no
    # effect on the output, matching the module's default behaviour.
    assert logits.shape == targets.shape
    orig_shape = logits.shape
    batch_size = orig_shape[0]
    n = math.prod(orig_shape)

    # Pick a free (row-major, no-copy) 2-D view of the data.
    if n % _LANES == 0:
        lanes = _LANES                                   # lane-dense view
    elif logits.ndim >= 2:
        lanes = orig_shape[-1]                           # keep natural last dim
    else:
        lanes = n
    num_rows = n // lanes
    x2d = logits.reshape(num_rows, lanes)
    t2d = targets.reshape(num_rows, lanes)

    # Row-tile sizing: ~target_tile_bytes per buffer (VMEM pads lanes to 128).
    lanes_padded = _round_up(lanes, _LANES)
    bytes_per_row = lanes_padded * 4                     # f32 VMEM layout
    if tile_rows is None:
        tile_rows = max(8, (target_tile_bytes // bytes_per_row) // 8 * 8)
    tile_rows = max(8, _round_up(int(tile_rows), 8))
    if tile_rows >= num_rows:
        tile_rows = num_rows        # single full-extent block (always legal)
    num_tiles = pl.cdiv(num_rows, tile_rows)

    kernel = functools.partial(_bce_l2l_kernel, n_valid=n)
    itemsize = jnp.dtype(logits.dtype).itemsize
    cost = pl.CostEstimate(
        flops=6 * n,
        transcendentals=2 * n,
        bytes_accessed=3 * n * itemsize + num_tiles * lanes * 4,
    )

    loss_m_2d, psums = pl.pallas_call(
        kernel,
        grid=(num_tiles,),
        in_specs=[
            pl.BlockSpec((tile_rows, lanes), lambda i: (i, 0)),
            pl.BlockSpec((tile_rows, lanes), lambda i: (i, 0)),
        ],
        out_specs=[
            pl.BlockSpec((tile_rows, lanes), lambda i: (i, 0)),
            pl.BlockSpec((1, 1, lanes), lambda i: (i, 0, 0)),
        ],
        out_shape=(
            jax.ShapeDtypeStruct((num_rows, lanes), logits.dtype),
            jax.ShapeDtypeStruct((num_tiles, 1, lanes), jnp.float32),
        ),
        compiler_params=pltpu.CompilerParams(
            dimension_semantics=("parallel",),
            vmem_limit_bytes=32 * 1024 * 1024,
        ),
        cost_estimate=cost,
    )(x2d, t2d)

    loss_m = loss_m_2d.reshape(orig_shape)               # free reshape back
    loss_sum = jnp.sum(psums)                            # tiny final reduce
    loss = loss_sum / batch_size if size_average else loss_sum
    return ([loss], [loss_m])


def _reference(logits, targets, size_average=True):
    x = logits.astype(jnp.float32)
    t = targets.astype(jnp.float32)
    loss_m = (1.0 - t) * x + jnp.maximum(-x, 0.0) + jnp.log1p(jnp.exp(-jnp.abs(x)))
    loss = loss_m.sum() / logits.shape[0] if size_average else loss_m.sum()
    return loss, loss_m


def _check(logits, targets, **kw):
    loss_list, loss_m_list = bce_loss_l2l(logits, targets, **kw)
    loss = jax.block_until_ready(loss_list[0])
    loss_m = jax.block_until_ready(loss_m_list[0])
    ref_loss, ref_loss_m = _reference(logits, targets,
                                      size_average=kw.get("size_average", True))
    assert loss_m.shape == ref_loss_m.shape
    assert jnp.allclose(loss_m, ref_loss_m, atol=1e-5, rtol=1e-5)
    assert jnp.allclose(loss, ref_loss, atol=1e-5, rtol=1e-5)


if __name__ == "__main__":
    key = jax.random.PRNGKey(0)
    k1, k2, k3, k4, k5, k6 = jax.random.split(key, 6)

    # Case 1: small [B, num_attrs] tensor; natural-last-dim path, single block.
    b1, c1 = 2, 32
    logits1 = jax.random.normal(k1, (b1, c1), dtype=jnp.float32)
    targets1 = (jax.random.uniform(k2, (b1, c1)) > 0.5).astype(jnp.float32)
    _check(logits1, targets1)

    # Case 2: num_attrs = 51 (PETA-like); natural-last-dim path, many tiles.
    b2, c2 = 64, 51
    logits2 = jax.random.normal(k3, (b2, c2), dtype=jnp.float32)
    targets2 = (jax.random.uniform(k4, (b2, c2)) > 0.5).astype(jnp.float32)
    _check(logits2, targets2, tile_rows=8)

    # Case 3: lane-aligned element count -> lane-dense (n/128, 128) path with a
    # partial boundary row-block (50 rows of 128, tile_rows=16).
    b3, c3 = 50, 128
    logits3 = jax.random.normal(k5, (b3, c3), dtype=jnp.float32)
    targets3 = (jax.random.uniform(k6, (b3, c3)) > 0.5).astype(jnp.float32)
    _check(logits3, targets3, tile_rows=16)

    # size_average=False branch.
    _check(logits2, targets2, size_average=False)

    print("KERNEL_OK")
</pallas_src>

<mosaic_0001>
module attributes {stable_mosaic.version = 11 : i64} {
  func.func @_bce_l2l_kernel(%arg0: i32, %arg1: memref<2x32xf32, #tpu.memory_space<vmem>>, %arg2: memref<2x32xf32, #tpu.memory_space<vmem>>, %arg3: memref<2x32xf32, #tpu.memory_space<vmem>>, %arg4: memref<1x1x32xf32, #tpu.memory_space<vmem>>) attributes {dimension_semantics = [#tpu.dimension_semantics<parallel>], iteration_bounds = array<i64: 1>, scalar_prefetch = 0 : i64, scratch_operands = 0 : i64, tpu.core_type = #tpu.core_type<tc>, window_params = [{transform_indices = @transform_0, window_bounds = array<i64: 2, 32>}, {transform_indices = @transform_1, window_bounds = array<i64: 2, 32>}, {transform_indices = @transform_2, window_bounds = array<i64: 2, 32>}, {transform_indices = @transform_3, window_bounds = array<i64: 1, 1, 32>}]} {
    %c0 = arith.constant 0 : index
    %c0_0 = arith.constant 0 : index
    %0 = vector.load %arg1[%c0, %c0_0] : memref<2x32xf32, #tpu.memory_space<vmem>>, vector<2x32xf32>
    %c0_1 = arith.constant 0 : index
    %c0_2 = arith.constant 0 : index
    %1 = vector.load %arg2[%c0_1, %c0_2] : memref<2x32xf32, #tpu.memory_space<vmem>>, vector<2x32xf32>
    %cst = arith.constant 1.000000e+00 : f32
    %2 = vector.broadcast %cst : f32 to vector<2x32xf32>
    %3 = arith.subf %2, %1 : vector<2x32xf32>
    %4 = arith.mulf %3, %0 : vector<2x32xf32>
    %cst_3 = arith.constant 0.000000e+00 : f32
    %5 = vector.broadcast %cst_3 : f32 to vector<2x32xf32>
    %6 = arith.subf %5, %0 : vector<2x32xf32>
    %cst_4 = arith.constant 0.000000e+00 : f32
    %7 = vector.broadcast %cst_4 : f32 to vector<2x32xf32>
    %8 = arith.maximumf %6, %7 : vector<2x32xf32>
    %9 = arith.addf %4, %8 : vector<2x32xf32>
    %10 = math.absf %0 : vector<2x32xf32>
    %cst_5 = arith.constant 0.000000e+00 : f32
    %11 = vector.broadcast %cst_5 : f32 to vector<2x32xf32>
    %12 = arith.subf %11, %10 : vector<2x32xf32>
    %13 = math.exp %12 : vector<2x32xf32>
    %14 = math.log1p %13 : vector<2x32xf32>
    %15 = arith.addf %9, %14 : vector<2x32xf32>
    %16 = tpu.iota {dimensions = array<i32: 0>} : vector<2x32xi32>
    %17 = tpu.iota {dimensions = array<i32: 1>} : vector<2x32xi32>
    %c2_i32 = arith.constant 2 : i32
    %18 = arith.muli %arg0, %c2_i32 : i32
    %19 = vector.broadcast %18 : i32 to vector<2x32xi32>
    %20 = arith.addi %19, %16 : vector<2x32xi32>
    %c32_i32 = arith.constant 32 : i32
    %21 = vector.broadcast %c32_i32 : i32 to vector<2x32xi32>
    %22 = arith.muli %20, %21 : vector<2x32xi32>
    %23 = arith.addi %22, %17 : vector<2x32xi32>
    %c64_i32 = arith.constant 64 : i32
    %24 = vector.broadcast %c64_i32 : i32 to vector<2x32xi32>
    %25 = arith.cmpi slt, %23, %24 : vector<2x32xi32>
    %cst_6 = arith.constant 0.000000e+00 : f32
    %26 = vector.broadcast %cst_6 : f32 to vector<2x32xf32>
    %27 = arith.select %25, %15, %26 : vector<2x32xi1>, vector<2x32xf32>
    %c0_7 = arith.constant 0 : index
    %c0_8 = arith.constant 0 : index
    %28 = vector.load %arg3[%c0_7, %c0_8] : memref<2x32xf32, #tpu.memory_space<vmem>>, vector<2x32xf32>
    tpu.vector_store %arg3[%c0_7, %c0_8], %27 {strides = array<i32>} : memref<2x32xf32, #tpu.memory_space<vmem>>, vector<2x32xf32>,
    %cst_9 = arith.constant dense<0.000000e+00> : vector<32xf32>
    %29 = vector.multi_reduction <add>, %27, %cst_9 [0] : vector<2x32xf32> to vector<32xf32>
    %30 = vector.shape_cast %29 : vector<32xf32> to vector<1x32xf32>
    %31 = vector.shape_cast %30 : vector<1x32xf32> to vector<1x1x32xf32>
    %c0_10 = arith.constant 0 : index
    %c0_11 = arith.constant 0 : index
    %c0_12 = arith.constant 0 : index
    %32 = vector.load %arg4[%c0_10, %c0_11, %c0_12] : memref<1x1x32xf32, #tpu.memory_space<vmem>>, vector<1x1x32xf32>
    tpu.vector_store %arg4[%c0_10, %c0_11, %c0_12], %31 {strides = array<i32>} : memref<1x1x32xf32, #tpu.memory_space<vmem>>, vector<1x1x32xf32>,
    return
  }
  func.func @transform_0(%arg0: i32) -> (i32, i32) {
    %c0_i32 = arith.constant 0 : i32
    %c0_i32_0 = arith.constant 0 : i32
    return %arg0, %c0_i32 : i32, i32
  }
  func.func @transform_1(%arg0: i32) -> (i32, i32) {
    %c0_i32 = arith.constant 0 : i32
    %c0_i32_0 = arith.constant 0 : i32
    return %arg0, %c0_i32 : i32, i32
  }
  func.func @transform_2(%arg0: i32) -> (i32, i32) {
    %c0_i32 = arith.constant 0 : i32
    %c0_i32_0 = arith.constant 0 : i32
    return %arg0, %c0_i32 : i32, i32
  }
  func.func @transform_3(%arg0: i32) -> (i32, i32, i32) {
    %c0_i32 = arith.constant 0 : i32
    %c0_i32_0 = arith.constant 0 : i32
    %c0_i32_1 = arith.constant 0 : i32
    return %arg0, %c0_i32, %c0_i32_0 : i32, i32, i32
  }
}

</mosaic_0001>

<llo_original>
// kernel: tpu_custom_call.1
$region0: #{tpu_custom_call.1}
  #allocation0 [shape = 'u32[]', space=smem, size = 0x4, offset = 0x4, fixed_abs, tag = 'smem constant byte address 0x4 - core index']
  #allocation1 [shape = 'u32[144,128]{1,0:T(1,128)}', space=vmem, size = 0x12000, scoped, tag = 'internal scratch']
  %s0 = inlined_call_operand.hbm [shape: f32[2,32], index: 0, kind: input, shape index: {}]
  %s1 = inlined_call_operand.hbm [shape: f32[2,32], index: 1, kind: input, shape index: {}]
  %s2 = inlined_call_operand.hbm [shape: f32[2,32], index: 2, kind: output, shape index: {0}]
  %s3 = inlined_call_operand.hbm [shape: f32[1,1,32], index: 3, kind: output, shape index: {1}]
  %4 = xla_tuple %s2, %s3
  %s5 = sld [smem:[#allocation0]]
  $region34: #{tpu_custom_call.1} parent=0
    _
  %s7 = ssub.s32 1, %s5
  %s8 = scalar_select 0, %s7, %s5
  $region1: #{tpu_custom_call.1} parent=0
    #allocation2 [shape = 'u8[1024]{0}', space=vmem, size = 0x400, scoped, tag = 'input window, operand 0, single buffered']
    #allocation3 [shape = 's32[1]{0}', space=sflag, size = 0x4, scoped, tag = 'scoped memory for tpu_custom_call.1']
    #allocation4 [shape = 's32[1]{0}', space=sflag, size = 0x4, scoped, tag = 'scoped memory for tpu_custom_call.1']
    #allocation5 [shape = 'u8[1024]{0}', space=vmem, size = 0x400, scoped, tag = 'input window, operand 1, single buffered']
    #allocation6 [shape = 's32[1]{0}', space=sflag, size = 0x4, scoped, tag = 'scoped memory for tpu_custom_call.1']
    #allocation7 [shape = 'u8[1024]{0}', space=vmem, size = 0x400, scoped, tag = 'output window, operand 0, single buffered']
    #allocation8 [shape = 'u8[512]{0}', space=vmem, size = 0x400, scoped, tag = 'output window, operand 1, single buffered']
    #allocation9 [shape = 's32[1]{0}', space=sflag, size = 0x4, scoped, tag = 'scoped memory for tpu_custom_call.1']
    %9 = vsyncpa [#allocation3], 0
    %10 = vsyncpa [#allocation6], 0
    %11 = vsyncpa [#allocation4], 0
    %12 = vsyncpa [#allocation9], 0
    // Predicated region
    $region2: #{tpu_custom_call.1} parent=1 // pred_check
      _
    $region3: #{tpu_custom_call.1} parent=1 // pred_check_branch
      %14 = sbr.rel (0) target = $region5
    $region4: #{tpu_custom_call.1} parent=1 // pred_region
      %s16 = ssub.s32 32, 32
      %17 = vsyncadd [#allocation3], %s16
      %s19 = sshll.u32 [#allocation2], 4
      %s20 = int_to_ptr.vmem [resolvable:$true] %s19
      %22 = dma.hbm_to_vmem [thread:$0]  %s0, 32, %s20, [#allocation3]
    $region5: #{tpu_custom_call.1} parent=1 // pred_fallthru
      _
    // Predicated region
    $region6: #{tpu_custom_call.1} parent=1 // pred_check
      _
    $region7: #{tpu_custom_call.1} parent=1 // pred_check_branch
      %24 = sbr.rel (0) target = $region9
    $region8: #{tpu_custom_call.1} parent=1 // pred_region
      %s26 = ssub.s32 32, 32
      %27 = vsyncadd [#allocation6], %s26
      %s29 = sshll.u32 [#allocation5], 4
      %s30 = int_to_ptr.vmem [resolvable:$true] %s29
      %32 = dma.hbm_to_vmem [thread:$0]  %s1, 32, %s30, [#allocation6]
    $region9: #{tpu_custom_call.1} parent=1 // pred_fallthru
      _
    // Predicated region
    $region10: #{tpu_custom_call.1} parent=1 // pred_check
      _
    $region11: #{tpu_custom_call.1} parent=1 // pred_check_branch
      %34 = sbr.rel (0) target = $region13
    $region12: #{tpu_custom_call.1} parent=1 // pred_region
      %35 = dma.done [#allocation3], 32
    $region13: #{tpu_custom_call.1} parent=1 // pred_fallthru
      _
    // Predicated region
    $region14: #{tpu_custom_call.1} parent=1 // pred_check
      _
    $region15: #{tpu_custom_call.1} parent=1 // pred_check_branch
      %37 = sbr.rel (0) target = $region17
    $region16: #{tpu_custom_call.1} parent=1 // pred_region
      %38 = dma.done [#allocation6], 32
    $region17: #{tpu_custom_call.1} parent=1 // pred_fallthru
      _
    %v39 = vld [vmem:[#allocation2] sm:$0x3]
    %v40 = vld [vmem:[#allocation5] sm:$0x3]
    %v41 = vsub.f32 1.0, %v40
    %v42 = vmul.f32 %v41, %v39
    %v43 = vsub.f32 0.0, %v39
    %v44 = vmax.f32 %v43, 0.0
    %v45 = vadd.f32 %v42, %v44
    %v46 = vand.u32 2147483647, %v39
    %v47 = vsub.f32 0.0, %v46
    %v48 = vmul.f32 %v47, 1.442695
    %v49 = vpow.pop %v48
    %v50 = vadd.f32 %v49, 1.0
    %v51 = vlog2.pop %v50
    %v52 = vmul.f32 %v51, 0.6931472
    %v53 = vmul.f32 -0.5, %v49
    %v54 = vadd.f32 %v53, 1.0
    %v55 = vmul.f32 %v54, %v49
    %v56 = vand.u32 2147483647, %v49
    %vm57 = vcmp.lt.f32.partialorder %v56, 0.0004427343
    %v58 = vsel %vm57, %v55, %v52
    %v59 = vadd.f32 %v45, %v58
    %v60 = vlaneseq
    %v61 = vshrl.u32 %v60, 7
    %v62 = vlaneseq
    %v63 = vand.u32 %v62, 127
    %s64 = smul.u32 0, 2
    %v65 = vstv %s64
    %v66 = vadd.s32 %v65, %v61
    %v67 = vmul.u32 %v66, 32
    %v68 = vadd.s32 %v67, %v63
    %vm69 = vcmp.lt.s32.totalorder %v68, 64
    %v70 = vsel %vm69, %v59, 0.0
    %vm71 = vcmask 254976
    %72 = vst.msk [vmem:[#allocation7] sm:$0x3] %vm71, %v70
    %v73 = vsel %vm71, %v70, 0.0
    %v74 = vrot.slane %v73, 4
    %v75 = vadd.f32 %v73, %v74
    %v76 = vrot.slane %v75, 2
    %v77 = vadd.f32 %v75, %v76
    %v78 = vrot.slane %v77, 1
    %v79 = vadd.f32 %v77, %v78
    %vm80 = vcmask 253952
    %81 = vst.msk [vmem:[#allocation8] sm:$0x1] %vm80, %v79
    // Predicated region
    $region18: #{tpu_custom_call.1} parent=1 // pred_check
      _
    $region19: #{tpu_custom_call.1} parent=1 // pred_check_branch
      %83 = sbr.rel (0) target = $region21
    $region20: #{tpu_custom_call.1} parent=1 // pred_region
      %s85 = ssub.s32 32, 32
      %86 = vsyncadd [#allocation4], %s85
      %s88 = sshll.u32 [#allocation7], 4
      %s89 = int_to_ptr.vmem [resolvable:$true] %s88
      %91 = dma.vmem_to_hbm [thread:$0]  %s89, 32, %s2, [#allocation4]
    $region21: #{tpu_custom_call.1} parent=1 // pred_fallthru
      _
    // Predicated region
    $region22: #{tpu_custom_call.1} parent=1 // pred_check
      _
    $region23: #{tpu_custom_call.1} parent=1 // pred_check_branch
      %93 = sbr.rel (0) target = $region25
    $region24: #{tpu_custom_call.1} parent=1 // pred_region
      %s95 = ssub.s32 16, 16
      %96 = vsyncadd [#allocation9], %s95
      %s98 = sshll.u32 [#allocation8], 4
      %s99 = int_to_ptr.vmem [resolvable:$true] %s98
      %101 = dma.vmem_to_hbm [thread:$0]  %s99, 16, %s3, [#allocation9]
    $region25: #{tpu_custom_call.1} parent=1 // pred_fallthru
      _
    // Predicated region
    $region26: #{tpu_custom_call.1} parent=1 // pred_check
      _
    $region27: #{tpu_custom_call.1} parent=1 // pred_check_branch
      %103 = sbr.rel (0) target = $region29
    $region28: #{tpu_custom_call.1} parent=1 // pred_region
      %104 = dma.done [#allocation4], 32
    $region29: #{tpu_custom_call.1} parent=1 // pred_fallthru
      _
    // Predicated region
    $region30: #{tpu_custom_call.1} parent=1 // pred_check
      _
    $region31: #{tpu_custom_call.1} parent=1 // pred_check_branch
      %106 = sbr.rel (0) target = $region33
    $region32: #{tpu_custom_call.1} parent=1 // pred_region
      %107 = dma.done [#allocation9], 16
    $region33: #{tpu_custom_call.1} parent=1 // pred_fallthru
      _
    %108 = vsyncpa [#allocation3], 1
    %109 = vsyncpa [#allocation6], 1
    %110 = vsyncpa [#allocation4], 1
    %111 = vsyncpa [#allocation9], 1

</llo_original>
